<compile_context>
chip_gen: v6e
topology: v6e:2x2x1
jax: 0.10.0
libtpu: 0.0.40
codegen_flags: <defaults>
</compile_context>

<pallas_src>
import jax
import jax.numpy as jnp
from jax.experimental import pallas as pl
from jax.experimental.pallas import tpu as pltpu


def _pick_time_tile(T):
    """Largest 128-multiple tile that divides T (falls back to full T)."""
    for tt in (1024, 512, 256, 128):
        if T % tt == 0:
            return tt
    return T


def _make_kernel(tT, out_splits):
    """Build the fused conv+heads kernel for a given time tile and head layout."""

    def kernel(x_ref, w_fe_ref, b_fe_ref, w_h_ref, b_h_ref, *out_refs):
        # x_ref:    (C_in, T+2) bf16, zero-padded along time (k=3, pad=1), full
        #           time resident per batch element.
        # w_fe_ref: (F, 3*C_in) bf16   fused conv taps (im2col weight)
        # b_fe_ref: (F, 1)      f32
        # w_h_ref:  (R, F)      bf16   fused predictor+ssl head weight
        # b_h_ref:  (R, 1)      f32
        # out_refs: one (rows, tT) f32 block per active head (NCW layout).
        t = pl.program_id(1)
        start = pl.multiple_of(t * tT, tT)              # 128-aligned window start

        # Aligned window with +2 halo columns, then im2col: stack the 3 taps
        # along the channel (sublane) axis -> single K=3*C_in matmul.
        win = x_ref[:, pl.ds(start, tT + 2)]            # (C_in, tT+2) bf16
        xcol = jnp.concatenate(
            [win[:, 0:tT], win[:, 1:tT + 1], win[:, 2:tT + 2]], axis=0)  # (3*C_in, tT)

        # Feature extractor: one bf16 MXU matmul, f32 accumulation.
        feat = jnp.dot(w_fe_ref[...], xcol, preferred_element_type=jnp.float32)
        feat = jnp.maximum(feat + b_fe_ref[...], 0.0)   # bias + ReLU in f32

        # Fused heads (predictor + ssl_target) in one matmul; slice rows per head.
        # TODO(synk): for very large tT*F, consume `feat` in 128-row sub-chunks
        # instead of one live value to avoid vreg spills.
        heads = jnp.dot(w_h_ref[...], feat.astype(w_h_ref.dtype),
                        preferred_element_type=jnp.float32) + b_h_ref[...]
        for o_ref, (r0, nr) in zip(out_refs, out_splits):
            o_ref[...] = heads[r0:r0 + nr, :].astype(o_ref.dtype)

    return kernel


def model_forward(x_ncw, params, ssl_xs=None, tag=None,
                  ssl_active=True, main_task_active=True):
    """Mirror of Model.forward: returns (prediction, ssl_out).

    'ssl_target' SSL type uses the main features, so ssl_xs is accepted but
    unused (matches the base-class forward for that ssl_type).
    """
    # TODO(synk): `tag`/prompt_function path and multi-extractor chaining are
    # config-dependent in the base class; only the single-extractor path is built.
    w_fe, b_fe, w_pred, b_pred, w_ssl, b_ssl = params
    B, C_in, T = x_ncw.shape
    F = w_fe.shape[-1]
    n_cls = w_pred.shape[-1]

    if not ssl_active and not main_task_active:
        return None, None

    tT = _pick_time_tile(T)
    nT = T // tT
    Tp = T + 2

    # NCW input already has (channels, time) per batch -> no transpose needed.
    # TODO(synk): fold the +/-1 zero padding into in-kernel boundary masking to
    # avoid this extra HBM pass over the input.
    x_pad = jnp.pad(x_ncw.astype(jnp.bfloat16), ((0, 0), (0, 0), (1, 1)))

    # Fused conv weight: (F, 3*C_in), taps stacked along K to match the kernel's
    # im2col order ([tap0 channels, tap1 channels, tap2 channels]).
    w_fe2d = jnp.transpose(w_fe.reshape(3 * C_in, F)).astype(jnp.bfloat16)
    b_fe_col = b_fe.reshape(F, 1).astype(jnp.float32)

    # Fused head weights: only the statically-active heads are included.
    head_ws, head_bs, out_splits, out_shapes = [], [], [], []
    row = 0
    if main_task_active:
        head_ws.append(jnp.transpose(w_pred))            # (n_cls, F)
        head_bs.append(b_pred)
        out_splits.append((row, n_cls))
        out_shapes.append((B, n_cls, T))
        row += n_cls
    if ssl_active:
        head_ws.append(jnp.transpose(w_ssl))             # (C_in, F)
        head_bs.append(b_ssl)
        out_splits.append((row, C_in))
        out_shapes.append((B, C_in, T))
        row += C_in
    R = row
    w_h = jnp.concatenate(head_ws, axis=0).astype(jnp.bfloat16)          # (R, F)
    b_h = jnp.concatenate(head_bs, axis=0).reshape(R, 1).astype(jnp.float32)

    kernel = _make_kernel(tT, out_splits)

    outs = pl.pallas_call(
        kernel,
        out_shape=tuple(jax.ShapeDtypeStruct(s, jnp.float32) for s in out_shapes),
        grid_spec=pltpu.PrefetchScalarGridSpec(
            num_scalar_prefetch=0,
            grid=(B, nT),
            in_specs=[
                # Full padded time per batch, resident across the time-tile axis
                # (block index constant along t -> DMA'd once per batch).
                pl.BlockSpec((pl.Squeezed(), C_in, Tp), lambda b, t: (b, 0, 0)),
                pl.BlockSpec((F, 3 * C_in), lambda b, t: (0, 0)),
                pl.BlockSpec((F, 1), lambda b, t: (0, 0)),
                pl.BlockSpec((R, F), lambda b, t: (0, 0)),
                pl.BlockSpec((R, 1), lambda b, t: (0, 0)),
            ],
            out_specs=[
                pl.BlockSpec((pl.Squeezed(), nr, tT), lambda b, t: (b, 0, t))
                for (_, nr) in out_splits
            ],
        ),
        compiler_params=pltpu.CompilerParams(
            dimension_semantics=("parallel", "parallel"),
            vmem_limit_bytes=32 * 1024 * 1024,   # well under v7x's 64 MiB / TC
        ),
    )(x_pad, w_fe2d, b_fe_col, w_h, b_h)

    if not isinstance(outs, (list, tuple)):
        outs = (outs,)
    idx = 0
    prediction = None
    ssl_out = None
    if main_task_active:
        prediction = outs[idx]
        idx += 1
    if ssl_active:
        ssl_out = [outs[idx]]
        idx += 1
    return prediction, ssl_out


def reference_forward(x_ncw, params):
    """Pure-JAX reference mirroring the kernel's bf16 operand quantization."""
    w_fe, b_fe, w_pred, b_pred, w_ssl, b_ssl = params
    bf = lambda a: a.astype(jnp.bfloat16).astype(jnp.float32)
    B, C_in, T = x_ncw.shape
    F = w_fe.shape[-1]
    xp = jnp.pad(bf(x_ncw), ((0, 0), (0, 0), (1, 1)))          # (B, C_in, T+2)
    feat = jnp.zeros((B, F, T), jnp.float32) + b_fe.reshape(1, F, 1)
    for k in range(3):
        feat = feat + jnp.einsum('cf,bct->bft', bf(w_fe[k]), xp[:, :, k:k + T])
    feat = jnp.maximum(feat, 0.0)
    featq = bf(feat)
    pred = jnp.einsum('fn,bft->bnt', bf(w_pred), featq) + b_pred.reshape(1, -1, 1)
    ssl = jnp.einsum('fc,bft->bct', bf(w_ssl), featq) + b_ssl.reshape(1, -1, 1)
    return pred, [ssl]


if __name__ == "__main__":
    B, C_in, T = 2, 16, 256     # batch, input channels, time (2x2 parallel grid)
    F, n_cls = 32, 8            # feature width, number of classes

    key = jax.random.PRNGKey(0)
    kx, kssl, k1, k2, k3, k4, k5, k6 = jax.random.split(key, 8)

    x = jax.random.normal(kx, (B, C_in, T), dtype=jnp.float32)
    ssl_xs = [jax.random.normal(kssl, (B, C_in, T), dtype=jnp.float32)]  # unused by 'ssl_target'

    # Synthetic parameters (PyTorch Conv1d weights in (taps, in, out) / (in, out)
    # matmul layout; independent keys for every tensor).
    params = (
        0.1 * jax.random.normal(k1, (3, C_in, F), dtype=jnp.float32),   # w_fe
        0.1 * jax.random.normal(k2, (F,), dtype=jnp.float32),           # b_fe
        0.1 * jax.random.normal(k3, (F, n_cls), dtype=jnp.float32),     # w_pred
        0.1 * jax.random.normal(k4, (n_cls,), dtype=jnp.float32),       # b_pred
        0.1 * jax.random.normal(k5, (F, C_in), dtype=jnp.float32),      # w_ssl
        0.1 * jax.random.normal(k6, (C_in,), dtype=jnp.float32),        # b_ssl
    )

    pred, ssl_out = model_forward(x, params, ssl_xs=ssl_xs)
    pred = jax.block_until_ready(pred)
    ssl0 = jax.block_until_ready(ssl_out[0])

    ref_pred, ref_ssl = reference_forward(x, params)
    assert pred.shape == (B, n_cls, T)
    assert ssl0.shape == (B, C_in, T)
    assert jnp.allclose(pred, ref_pred, atol=5e-3, rtol=5e-3)
    assert jnp.allclose(ssl0, ref_ssl[0], atol=5e-3, rtol=5e-3)

    print("KERNEL_OK")
</pallas_src>

<mosaic_0001>
module attributes {stable_mosaic.version = 11 : i64} {
  func.func @kernel(%arg0: i32, %arg1: i32, %arg2: memref<1x16x258xbf16, #tpu.memory_space<vmem>>, %arg3: memref<32x48xbf16, #tpu.memory_space<vmem>>, %arg4: memref<32x1xf32, #tpu.memory_space<vmem>>, %arg5: memref<24x32xbf16, #tpu.memory_space<vmem>>, %arg6: memref<24x1xf32, #tpu.memory_space<vmem>>, %arg7: memref<1x8x256xf32, #tpu.memory_space<vmem>>, %arg8: memref<1x16x256xf32, #tpu.memory_space<vmem>>) attributes {dimension_semantics = [#tpu.dimension_semantics<parallel>, #tpu.dimension_semantics<parallel>], iteration_bounds = array<i64: 2, 1>, scalar_prefetch = 0 : i64, scratch_operands = 0 : i64, tpu.core_type = #tpu.core_type<tc>, window_params = [{transform_indices = @transform_0, window_bounds = array<i64: 1, 16, 258>}, {pipeline_mode = #tpu.pipeline_mode<synchronous>, transform_indices = @transform_1, window_bounds = array<i64: 32, 48>}, {pipeline_mode = #tpu.pipeline_mode<synchronous>, transform_indices = @transform_2, window_bounds = array<i64: 32, 1>}, {pipeline_mode = #tpu.pipeline_mode<synchronous>, transform_indices = @transform_3, window_bounds = array<i64: 24, 32>}, {pipeline_mode = #tpu.pipeline_mode<synchronous>, transform_indices = @transform_4, window_bounds = array<i64: 24, 1>}, {transform_indices = @transform_5, window_bounds = array<i64: 1, 8, 256>}, {transform_indices = @transform_6, window_bounds = array<i64: 1, 16, 256>}]} {
    %c256_i32 = arith.constant 256 : i32
    %0 = arith.muli %arg1, %c256_i32 : i32
    %1 = tpu.assume_multiple %0, 256 : i32
    %c0 = arith.constant 0 : index
    %c0_0 = arith.constant 0 : index
    %2 = arith.index_cast %1 : i32 to index
    %3 = vector.load %arg2[%c0, %c0_0, %2] : memref<1x16x258xbf16, #tpu.memory_space<vmem>>, vector<1x16x258xbf16>
    %4 = vector.shape_cast %3 : vector<1x16x258xbf16> to vector<16x258xbf16>
    %5 = vector.extract_strided_slice %4 {offsets = [0, 0], sizes = [16, 256], strides = [1, 1]} : vector<16x258xbf16> to vector<16x256xbf16>
    %6 = vector.extract_strided_slice %4 {offsets = [0, 1], sizes = [16, 256], strides = [1, 1]} : vector<16x258xbf16> to vector<16x256xbf16>
    %7 = vector.extract_strided_slice %4 {offsets = [0, 2], sizes = [16, 256], strides = [1, 1]} : vector<16x258xbf16> to vector<16x256xbf16>
    %8 = tpu.concatenate %5, %6, %7 in 0 : vector<16x256xbf16>, vector<16x256xbf16>, vector<16x256xbf16> -> vector<48x256xbf16>
    %c0_1 = arith.constant 0 : index
    %c0_2 = arith.constant 0 : index
    %9 = vector.load %arg3[%c0_1, %c0_2] : memref<32x48xbf16, #tpu.memory_space<vmem>>, vector<32x48xbf16>
    %cst = arith.constant dense<0.000000e+00> : vector<32x256xf32>
    %10 = tpu.matmul %9, %8, %cst {dimension_numbers = #tpu.dot_dimension_numbers<[1], [0], [0], [1], [0, 0, 1, 1], [], []>} : vector<32x48xbf16>, vector<48x256xbf16>, vector<32x256xf32> -> vector<32x256xf32>
    %c0_3 = arith.constant 0 : index
    %c0_4 = arith.constant 0 : index
    %11 = vector.load %arg4[%c0_3, %c0_4] : memref<32x1xf32, #tpu.memory_space<vmem>>, vector<32x1xf32>
    %12 = vector.broadcast %11 : vector<32x1xf32> to vector<32x256xf32>
    %13 = arith.addf %10, %12 : vector<32x256xf32>
    %cst_5 = arith.constant 0.000000e+00 : f32
    %14 = vector.broadcast %cst_5 : f32 to vector<32x256xf32>
    %15 = arith.maximumf %13, %14 : vector<32x256xf32>
    %c0_6 = arith.constant 0 : index
    %c0_7 = arith.constant 0 : index
    %16 = vector.load %arg5[%c0_6, %c0_7] : memref<24x32xbf16, #tpu.memory_space<vmem>>, vector<24x32xbf16>
    %17 = arith.truncf %15 : vector<32x256xf32> to vector<32x256xbf16>
    %cst_8 = arith.constant dense<0.000000e+00> : vector<24x256xf32>
    %18 = tpu.matmul %16, %17, %cst_8 {dimension_numbers = #tpu.dot_dimension_numbers<[1], [0], [0], [1], [0, 0, 1, 1], [], []>} : vector<24x32xbf16>, vector<32x256xbf16>, vector<24x256xf32> -> vector<24x256xf32>
    %c0_9 = arith.constant 0 : index
    %c0_10 = arith.constant 0 : index
    %19 = vector.load %arg6[%c0_9, %c0_10] : memref<24x1xf32, #tpu.memory_space<vmem>>, vector<24x1xf32>
    %20 = vector.broadcast %19 : vector<24x1xf32> to vector<24x256xf32>
    %21 = arith.addf %18, %20 : vector<24x256xf32>
    %22 = vector.extract_strided_slice %21 {offsets = [0, 0], sizes = [8, 256], strides = [1, 1]} : vector<24x256xf32> to vector<8x256xf32>
    %c0_11 = arith.constant 0 : index
    %c0_12 = arith.constant 0 : index
    %c0_13 = arith.constant 0 : index
    %23 = vector.load %arg7[%c0_11, %c0_12, %c0_13] : memref<1x8x256xf32, #tpu.memory_space<vmem>>, vector<1x8x256xf32>
    %24 = vector.shape_cast %23 : vector<1x8x256xf32> to vector<8x256xf32>
    %25 = vector.shape_cast %22 : vector<8x256xf32> to vector<1x8x256xf32>
    tpu.vector_store %arg7[%c0_11, %c0_12, %c0_13], %25 {strides = array<i32>} : memref<1x8x256xf32, #tpu.memory_space<vmem>>, vector<1x8x256xf32>,
    %26 = vector.extract_strided_slice %21 {offsets = [8, 0], sizes = [16, 256], strides = [1, 1]} : vector<24x256xf32> to vector<16x256xf32>
    %c0_14 = arith.constant 0 : index
    %c0_15 = arith.constant 0 : index
    %c0_16 = arith.constant 0 : index
    %27 = vector.load %arg8[%c0_14, %c0_15, %c0_16] : memref<1x16x256xf32, #tpu.memory_space<vmem>>, vector<1x16x256xf32>
    %28 = vector.shape_cast %27 : vector<1x16x256xf32> to vector<16x256xf32>
    %29 = vector.shape_cast %26 : vector<16x256xf32> to vector<1x16x256xf32>
    tpu.vector_store %arg8[%c0_14, %c0_15, %c0_16], %29 {strides = array<i32>} : memref<1x16x256xf32, #tpu.memory_space<vmem>>, vector<1x16x256xf32>,
    return
  }
  func.func @transform_0(%arg0: i32, %arg1: i32) -> (i32, i32, i32) {
    %c0_i32 = arith.constant 0 : i32
    %c0_i32_0 = arith.constant 0 : i32
    %c0_i32_1 = arith.constant 0 : i32
    return %arg0, %c0_i32, %c0_i32_0 : i32, i32, i32
  }
  func.func @transform_1(%arg0: i32, %arg1: i32) -> (i32, i32) {
    %c0_i32 = arith.constant 0 : i32
    %c0_i32_0 = arith.constant 0 : i32
    %c0_i32_1 = arith.constant 0 : i32
    return %c0_i32, %c0_i32_0 : i32, i32
  }
  func.func @transform_2(%arg0: i32, %arg1: i32) -> (i32, i32) {
    %c0_i32 = arith.constant 0 : i32
    %c0_i32_0 = arith.constant 0 : i32
    %c0_i32_1 = arith.constant 0 : i32
    return %c0_i32, %c0_i32_0 : i32, i32
  }
  func.func @transform_3(%arg0: i32, %arg1: i32) -> (i32, i32) {
    %c0_i32 = arith.constant 0 : i32
    %c0_i32_0 = arith.constant 0 : i32
    %c0_i32_1 = arith.constant 0 : i32
    return %c0_i32, %c0_i32_0 : i32, i32
  }
  func.func @transform_4(%arg0: i32, %arg1: i32) -> (i32, i32) {
    %c0_i32 = arith.constant 0 : i32
    %c0_i32_0 = arith.constant 0 : i32
    %c0_i32_1 = arith.constant 0 : i32
    return %c0_i32, %c0_i32_0 : i32, i32
  }
  func.func @transform_5(%arg0: i32, %arg1: i32) -> (i32, i32, i32) {
    %c0_i32 = arith.constant 0 : i32
    %c0_i32_0 = arith.constant 0 : i32
    return %arg0, %c0_i32, %arg1 : i32, i32, i32
  }
  func.func @transform_6(%arg0: i32, %arg1: i32) -> (i32, i32, i32) {
    %c0_i32 = arith.constant 0 : i32
    %c0_i32_0 = arith.constant 0 : i32
    return %arg0, %c0_i32, %arg1 : i32, i32, i32
  }
}

</mosaic_0001>

<llo_original>
// kernel: tpu_custom_call.1
$region0: #{tpu_custom_call.1}
  #allocation0 [shape = 'u32[]', space=smem, size = 0x4, offset = 0x4, fixed_abs, tag = 'smem constant byte address 0x4 - core index']
  #allocation1 [shape = 'u32[144,128]{1,0:T(1,128)}', space=vmem, size = 0x12000, scoped, tag = 'internal scratch']
  %s0 = inlined_call_operand.vmem [shape: bf16[2,16,258], index: 0, kind: input, shape index: {}]
  %s1 = inlined_call_operand.hbm [shape: bf16[32,48], index: 1, kind: input, shape index: {}]
  %s2 = inlined_call_operand.vmem [shape: f32[32,1], index: 2, kind: input, shape index: {}]
  %s3 = inlined_call_operand.vmem [shape: bf16[24,32], index: 3, kind: input, shape index: {}]
  %s4 = inlined_call_operand.vmem [shape: f32[24,1], index: 4, kind: input, shape index: {}]
  %s5 = inlined_call_operand.hbm [shape: f32[2,8,256], index: 5, kind: output, shape index: {0}]
  %s6 = inlined_call_operand.hbm [shape: f32[2,16,256], index: 6, kind: output, shape index: {1}]
  %7 = xla_tuple %s5, %s6
  %s8 = sld [smem:[#allocation0]]
  $region65: #{tpu_custom_call.1} parent=0
    _
  %s10 = ssub.s32 1, %s8
  %s11 = scalar_select 0, %s10, %s8
  $region1: #{tpu_custom_call.1} parent=0
    #allocation2 [shape = 'u8[8192]{0}', space=vmem, size = 0x2000, scoped, tag = 'input window, operand 1, single buffered']
    #allocation3 [shape = 's32[2]{0}', space=sflag, size = 0x8, scoped, tag = 'scoped memory for tpu_custom_call.1']
    #allocation4 [shape = 's32[2]{0}', space=sflag, size = 0x8, scoped, tag = 'scoped memory for tpu_custom_call.1']
    #allocation5 [shape = 'u8[16384]{0}', space=vmem, size = 0x4000, scoped, tag = 'output window, operand 0']
    #allocation6 [shape = 'u8[32768]{0}', space=vmem, size = 0x8000, scoped, tag = 'output window, operand 1']
    #allocation7 [shape = 's32[2]{0}', space=sflag, size = 0x8, scoped, tag = 'scoped memory for tpu_custom_call.1']
    %12 = vsyncpa [#allocation3], 0
    %13 = vsyncpa [#allocation4], 0
    %s14 = scalar_lea.sflag [#allocation4], 1
    %15 = vsyncpa %s14, 0
    %16 = vsyncpa [#allocation7], 0
    %s17 = scalar_lea.sflag [#allocation7], 1
    %18 = vsyncpa %s17, 0
    loop: start=0, step=1, limit=4
    $region2: #{tpu_custom_call.1} parent=1 // loop_pre_header
      _
    $region3: #{tpu_custom_call.1} parent=1 // loop_header
      %s20 = sphi 0, %s24
      %p21 = scmp.ge.s32.totalorder %s20, 4
      %s27 = sphi 0, %s39
      %s28 = sphi 0, %s35
      %s29 = sphi 0, %s27
      %s30 = sphi 0, %s28
      %s31 = sphi 0, %s29
      %s32 = sphi 0, %s30
      %s42 = sphi 0, %s44
      %s45 = sphi 0, %s42
      %s46 = sphi 0, %s45
      %s62 = sphi 0, %s46
      %s66 = sphi 0, %s66
      %s68 = sphi 0, %s66
      %s69 = sphi 0, %s68
      %s83 = sphi 0, %s69
      %s87 = sphi 0, %s87
      %s89 = sphi 0, %s87
      %s90 = sphi 0, %s89
      %s104 = sphi 0, %s90
      %s108 = sphi 0, %s108
      %s110 = sphi 0, %s108
      %s111 = sphi 0, %s110
      %s125 = sphi 0, %s111
      %s129 = sphi 0, %s129
      %s131 = sphi 0, %s129
      %s132 = sphi 0, %s131
      %s146 = sphi 0, %s132
      %s154 = sphi 0, %s156
      %s157 = sphi 0, %s154
      %s158 = sphi 0, %s157
      %s174 = sphi 0, %s158
      %s182 = sphi 0, %s184
      %s185 = sphi 0, %s182
      %s186 = sphi 0, %s185
      %s202 = sphi 0, %s186
    $region4: #{tpu_custom_call.1} parent=1 // loop_header_branch
      %23 = sbr.rel (%p21) target = $region8
    $region5: #{tpu_custom_call.1} parent=1 // loop_body
      %s25 = ssub.s32 %s20, 1
      %s26 = ssub.s32 %s20, 2
      %s33 = sadd.s32 1, %s28
      %p34 = scmp.ge.s32.totalorder %s33, 1
      %s35 = scalar_select %p34, 0, %s33
      %s36 = sadd.s32 1, %s27
      %s37 = scalar_select %p34, %s36, %s27
      %p38 = scmp.ge.s32.totalorder %s37, 2
      %s39 = scalar_select %p38, 0, %s37
      %s40 = ssub.s32 %s27, %s39
      %p41 = scmp.eq.s32.totalorder %s40, 0
      %s43 = sadd.s32 %s42, 1
      %s44 = scalar_select %p41, %s42, %s43
      %p47 = pneg %p41
      %p48 = scmp.eq.s32.totalorder %s20, 1
      %p49 = por %p47, %p48
      %p50 = scmp.ne.s32.totalorder %s42, %s45
      %p51 = scmp.eq.s32.totalorder %s20, 0
      %p52 = por %p50, %p51
      %p53 = scmp.ne.s32.totalorder %s42, %s45
      %p54 = scmp.eq.s32.totalorder %s25, 1
      %p55 = por %p53, %p54
      %p56 = scmp.ne.s32.totalorder %s45, %s46
      %p57 = scmp.eq.s32.totalorder %s25, 0
      %p58 = por %p56, %p57
      %p59 = scmp.ne.s32.totalorder %s45, %s46
      %p60 = scmp.eq.s32.totalorder %s26, 1
      %p61 = por %p59, %p60
      %p63 = scmp.ne.s32.totalorder %s46, %s62
      %p64 = scmp.eq.s32.totalorder %s26, 0
      %p65 = por %p63, %p64
      %s67 = sadd.s32 %s66, 1
      %p70 = scmp.eq.s32.totalorder %s20, 1
      %p71 = scmp.ne.s32.totalorder %s66, %s68
      %p72 = scmp.eq.s32.totalorder %s20, 0
      %p73 = por %p71, %p72
      %p74 = scmp.ne.s32.totalorder %s66, %s68
      %p75 = scmp.eq.s32.totalorder %s25, 1
      %p76 = por %p74, %p75
      %p77 = scmp.ne.s32.totalorder %s68, %s69
      %p78 = scmp.eq.s32.totalorder %s25, 0
      %p79 = por %p77, %p78
      %p80 = scmp.ne.s32.totalorder %s68, %s69
      %p81 = scmp.eq.s32.totalorder %s26, 1
      %p82 = por %p80, %p81
      %p84 = scmp.ne.s32.totalorder %s69, %s83
      %p85 = scmp.eq.s32.totalorder %s26, 0
      %p86 = por %p84, %p85
      %s88 = sadd.s32 %s87, 1
      %p91 = scmp.eq.s32.totalorder %s20, 1
      %p92 = scmp.ne.s32.totalorder %s87, %s89
      %p93 = scmp.eq.s32.totalorder %s20, 0
      %p94 = por %p92, %p93
      %p95 = scmp.ne.s32.totalorder %s87, %s89
      %p96 = scmp.eq.s32.totalorder %s25, 1
      %p97 = por %p95, %p96
      %p98 = scmp.ne.s32.totalorder %s89, %s90
      %p99 = scmp.eq.s32.totalorder %s25, 0
      %p100 = por %p98, %p99
      %p101 = scmp.ne.s32.totalorder %s89, %s90
      %p102 = scmp.eq.s32.totalorder %s26, 1
      %p103 = por %p101, %p102
      %p105 = scmp.ne.s32.totalorder %s90, %s104
      %p106 = scmp.eq.s32.totalorder %s26, 0
      %p107 = por %p105, %p106
      %s109 = sadd.s32 %s108, 1
      %p112 = scmp.eq.s32.totalorder %s20, 1
      %p113 = scmp.ne.s32.totalorder %s108, %s110
      %p114 = scmp.eq.s32.totalorder %s20, 0
      %p115 = por %p113, %p114
      %p116 = scmp.ne.s32.totalorder %s108, %s110
      %p117 = scmp.eq.s32.totalorder %s25, 1
      %p118 = por %p116, %p117
      %p119 = scmp.ne.s32.totalorder %s110, %s111
      %p120 = scmp.eq.s32.totalorder %s25, 0
      %p121 = por %p119, %p120
      %p122 = scmp.ne.s32.totalorder %s110, %s111
      %p123 = scmp.eq.s32.totalorder %s26, 1
      %p124 = por %p122, %p123
      %p126 = scmp.ne.s32.totalorder %s111, %s125
      %p127 = scmp.eq.s32.totalorder %s26, 0
      %p128 = por %p126, %p127
      %s130 = sadd.s32 %s129, 1
      %p133 = scmp.eq.s32.totalorder %s20, 1
      %p134 = scmp.ne.s32.totalorder %s129, %s131
      %p135 = scmp.eq.s32.totalorder %s20, 0
      %p136 = por %p134, %p135
      %p137 = scmp.ne.s32.totalorder %s129, %s131
      %p138 = scmp.eq.s32.totalorder %s25, 1
      %p139 = por %p137, %p138
      %p140 = scmp.ne.s32.totalorder %s131, %s132
      %p141 = scmp.eq.s32.totalorder %s25, 0
      %p142 = por %p140, %p141
      %p143 = scmp.ne.s32.totalorder %s131, %s132
      %p144 = scmp.eq.s32.totalorder %s26, 1
      %p145 = por %p143, %p144
      %p147 = scmp.ne.s32.totalorder %s132, %s146
      %p148 = scmp.eq.s32.totalorder %s26, 0
      %p149 = por %p147, %p148
      %s150 = ssub.s32 %s27, %s39
      %s151 = ssub.s32 %s28, %s35
      %s152 = sor.u32 %s150, %s151
      %p153 = scmp.eq.s32.totalorder %s152, 0
      %s155 = sadd.s32 %s154, 1
      %s156 = scalar_select %p153, %s154, %s155
      %p159 = pneg %p153
      %p160 = scmp.eq.s32.totalorder %s20, 1
      %p161 = por %p159, %p160
      %p162 = scmp.ne.s32.totalorder %s154, %s157
      %p163 = scmp.eq.s32.totalorder %s20, 0
      %p164 = por %p162, %p163
      %p165 = scmp.ne.s32.totalorder %s154, %s157
      %p166 = scmp.eq.s32.totalorder %s25, 1
      %p167 = por %p165, %p166
      %p168 = scmp.ne.s32.totalorder %s157, %s158
      %p169 = scmp.eq.s32.totalorder %s25, 0
      %p170 = por %p168, %p169
      %p171 = scmp.ne.s32.totalorder %s157, %s158
      %p172 = scmp.eq.s32.totalorder %s26, 1
      %p173 = por %p171, %p172
      %p175 = scmp.ne.s32.totalorder %s158, %s174
      %p176 = scmp.eq.s32.totalorder %s26, 0
      %p177 = por %p175, %p176
      %s178 = ssub.s32 %s27, %s39
      %s179 = ssub.s32 %s28, %s35
      %s180 = sor.u32 %s178, %s179
      %p181 = scmp.eq.s32.totalorder %s180, 0
      %s183 = sadd.s32 %s182, 1
      %s184 = scalar_select %p181, %s182, %s183
      %p187 = pneg %p181
      %p188 = scmp.eq.s32.totalorder %s20, 1
      %p189 = por %p187, %p188
      %p190 = scmp.ne.s32.totalorder %s182, %s185
      %p191 = scmp.eq.s32.totalorder %s20, 0
      %p192 = por %p190, %p191
      %p193 = scmp.ne.s32.totalorder %s182, %s185
      %p194 = scmp.eq.s32.totalorder %s25, 1
      %p195 = por %p193, %p194
      %p196 = scmp.ne.s32.totalorder %s185, %s186
      %p197 = scmp.eq.s32.totalorder %s25, 0
      %p198 = por %p196, %p197
      %p199 = scmp.ne.s32.totalorder %s185, %s186
      %p200 = scmp.eq.s32.totalorder %s26, 1
      %p201 = por %p199, %p200
      %p203 = scmp.ne.s32.totalorder %s186, %s202
      %p204 = scmp.eq.s32.totalorder %s26, 0
      %p205 = por %p203, %p204
      %p206 = scmp.le.s32.totalorder 1, %s20
      %p207 = scmp.lt.s32.totalorder %s20, 3
      %p208 = pnand %p206, %p207
      %p209 = pneg %p208
      // Predicated region
      $region9: #{tpu_custom_call.1} parent=5 // pred_check
        _
      $region10: #{tpu_custom_call.1} parent=5 // pred_check_branch
        %211 = sbr.rel (%p208) target = $region12
      $region11: #{tpu_custom_call.1} parent=5 // pred_region
        %s212 = ssub.s32 %s20, 1
        // Predicated region
        $region13: #{tpu_custom_call.1} parent=11 // pred_check
          %p213 = pneg %p79
        $region14: #{tpu_custom_call.1} parent=11 // pred_check_branch
          %215 = sbr.rel (%p213) target = $region16
        $region15: #{tpu_custom_call.1} parent=11 // pred_region
          %s217 = ssub.s32 256, 256
          %218 = vsyncadd [#allocation3], %s217
          %s219 = sshll.u32 [#allocation2], 4
          %s220 = int_to_ptr.vmem [resolvable:$true] %s219
          %225 = dma.hbm_to_vmem [thread:$0]  %s1, 256, %s220, [#allocation3], 64, 64, 4
        $region16: #{tpu_custom_call.1} parent=11 // pred_fallthru
          _
        // Predicated region
        $region17: #{tpu_custom_call.1} parent=11 // pred_check
          %p226 = pneg %p100
        $region18: #{tpu_custom_call.1} parent=11 // pred_check_branch
          %228 = sbr.rel (%p226) target = $region20
        $region19: #{tpu_custom_call.1} parent=11 // pred_region
          _
        $region20: #{tpu_custom_call.1} parent=11 // pred_fallthru
          _
        // Predicated region
        $region21: #{tpu_custom_call.1} parent=11 // pred_check
          %p229 = pneg %p121
        $region22: #{tpu_custom_call.1} parent=11 // pred_check_branch
          %231 = sbr.rel (%p229) target = $region24
        $region23: #{tpu_custom_call.1} parent=11 // pred_region
          _
        $region24: #{tpu_custom_call.1} parent=11 // pred_fallthru
          _
        // Predicated region
        $region25: #{tpu_custom_call.1} parent=11 // pred_check
          %p232 = pneg %p142
        $region26: #{tpu_custom_call.1} parent=11 // pred_check_branch
          %234 = sbr.rel (%p232) target = $region28
        $region27: #{tpu_custom_call.1} parent=11 // pred_region
          _
        $region28: #{tpu_custom_call.1} parent=11 // pred_fallthru
          _
      $region12: #{tpu_custom_call.1} parent=5 // pred_fallthru
        _
      %p235 = scmp.lt.s32.totalorder %s20, 2
      // Predicated region
      $region29: #{tpu_custom_call.1} parent=5 // pred_check
        %p236 = pneg %p235
      $region30: #{tpu_custom_call.1} parent=5 // pred_check_branch
        %238 = sbr.rel (%p236) target = $region32
      $region31: #{tpu_custom_call.1} parent=5 // pred_region
        // Predicated region
        $region33: #{tpu_custom_call.1} parent=31 // pred_check
          %p239 = pneg %p52
        $region34: #{tpu_custom_call.1} parent=31 // pred_check_branch
          %241 = sbr.rel (%p239) target = $region36
        $region35: #{tpu_custom_call.1} parent=31 // pred_region
          %p242 = scmp.lt.s32.totalorder %s27, 1
          %s243 = scalar_select %p242, %s27, 1
          %s244 = smul.addr %s243, 6
          %s245 = smul.addr %s244, 4
          %s246 = scalar_lea.vmem %s0, %s245
        $region36: #{tpu_custom_call.1} parent=31 // pred_fallthru
          _
      $region32: #{tpu_custom_call.1} parent=5 // pred_fallthru
        _
      %p247 = scmp.le.s32.totalorder 1, %s20
      %p248 = scmp.lt.s32.totalorder %s20, 3
      %p249 = pnand %p247, %p248
      %p250 = pneg %p249
      // Predicated region
      $region37: #{tpu_custom_call.1} parent=5 // pred_check
        _
      $region38: #{tpu_custom_call.1} parent=5 // pred_check_branch
        %252 = sbr.rel (%p249) target = $region40
      $region39: #{tpu_custom_call.1} parent=5 // pred_region
        %s253 = ssub.s32 %s20, 1
        // Predicated region
        $region41: #{tpu_custom_call.1} parent=39 // pred_check
          %p254 = pneg %p79
        $region42: #{tpu_custom_call.1} parent=39 // pred_check_branch
          %256 = sbr.rel (%p254) target = $region44
        $region43: #{tpu_custom_call.1} parent=39 // pred_region
          %257 = dma.done [#allocation3], 256
        $region44: #{tpu_custom_call.1} parent=39 // pred_fallthru
          _
        %p258 = scmp.lt.s32.totalorder %s29, 1
        %s259 = scalar_select %p258, %s29, 1
        %s260 = smul.addr %s259, 6
        %s261 = smul.addr %s260, 4
        %s262 = scalar_lea.vmem %s0, %s261
        %p263 = pneg %p58
        %p264 = pneg %p55
        %p265 = pneg %p79
        %p266 = pneg %p76
        %p267 = pneg %p100
        %p268 = pneg %p97
        %p269 = pneg %p121
        %p270 = pneg %p118
        %p271 = pneg %p142
        %p272 = pneg %p139
        %p273 = pneg %p170
        %p274 = pneg %p167
        %s275 = sand.u32 %s157, 1
        %s276 = scalar_lea.sflag [#allocation4], %s275
        %s277 = sand.u32 %s157, 1
        %s278 = smul.addr %s277, 16
        %s279 = scalar_lea.vmem [#allocation5], %s278
        %p280 = pneg %p198
        %p281 = pneg %p195
        %s282 = sand.u32 %s185, 1
        %s283 = scalar_lea.sflag [#allocation7], %s282
        %s284 = sand.u32 %s185, 1
        %s285 = smul.addr %s284, 32
        %s286 = scalar_lea.vmem [#allocation6], %s285
        %p287 = scmp.lt.s32.totalorder %s29, 1
        %s288 = scalar_select %p287, %s29, 1
        %s289 = smul.addr %s288, 6
        %s290 = smul.addr %s289, 4
        %s291 = scalar_lea.vmem %s0, %s290
        %s292 = smul.u32 2, %s30
        %s293 = smul.u32 2, %s30
        %s295 = smul.u32 %s30, 256
        %s296 = sshra.s32 %s295, 7
        %s297 = sand.u32 %s295, 127
        %s298 = smul.addr %s296, 4
        %s299 = scalar_lea.vmem %s291, %s298
        %v300 = vld [vmem:[%s299] sm:$0xff]
        %v301 = vld [vmem:[%s299 + $0x8] sm:$0xf]
        %v302 = vld [vmem:[%s299 + $0xc] sm:$0xff]
        %v303 = vld [vmem:[%s299 + $0x14] sm:$0xf]
        %v306 = vunpack.c.l.b16 %v300
        %v307 = vunpack.c.h.b16 %v300
        %v308 = vunpack.c.l.b16 %v302
        %v309 = vunpack.c.h.b16 %v302
        %v310 = vpack.c.b16 %v308, %v306
        %v311 = vpack.c.b16 %v309, %v307
        %v316 = vunpack.c.l.b16 %v301
        %v317 = vunpack.c.l.b16 %v303
        %v318 = vpack.c.b16 %v317, %v316
        %319 = vrot.lane.b32.xlu0 %v310, 127
        %v320 = vpop.permute.xlu0 %319
        %321 = vrot.lane.b32.xlu0 %v311, 127
        %v322 = vpop.permute.xlu0 %321
        %323 = vrot.lane.b32.xlu0 %v318, 127
        %v324 = vpop.permute.xlu0 %323
        %vm325 = vcmask 1039360
        %v326 = vsel %vm325, %v320, %v322
        %v327 = vsel %vm325, %v322, %v324
        %330 = vrot.lane.b32.xlu0 %v310, 126
        %v331 = vpop.permute.xlu0 %330
        %332 = vrot.lane.b32.xlu0 %v311, 126
        %v333 = vpop.permute.xlu0 %332
        %334 = vrot.lane.b32.xlu0 %v318, 126
        %v335 = vpop.permute.xlu0 %334
        %vm336 = vcmask 1031168
        %v337 = vsel %vm336, %v331, %v333
        %v338 = vsel %vm336, %v333, %v335
        %v341 = vld [vmem:[#allocation2] sm:$0xf]
        %v342 = vld [vmem:[#allocation2 + $0x4] sm:$0xf]
        %v343 = vld [vmem:[#allocation2 + $0x8] sm:$0xf]
        %v344 = vld [vmem:[#allocation2 + $0xc] sm:$0xf]
        %v345 = vld [vmem:[%s2] sm:$0xff]
        %v346 = vld [vmem:[%s2 + $0x8] sm:$0xff]
        %v347 = vld [vmem:[%s2 + $0x10] sm:$0xff]
        %v348 = vld [vmem:[%s2 + $0x18] sm:$0xff]
        %350 = vset.pattern.permute.xlu0 0
        %351 = vperm.xlu0 %350, %v345
        %v352 = vpop.permute.xlu0 %351
        %355 = vset.pattern.permute.xlu0 0
        %356 = vperm.xlu0 %355, %v346
        %v357 = vpop.permute.xlu0 %356
        %360 = vset.pattern.permute.xlu0 0
        %361 = vperm.xlu0 %360, %v347
        %v362 = vpop.permute.xlu0 %361
        %365 = vset.pattern.permute.xlu0 0
        %366 = vperm.xlu0 %365, %v348
        %v367 = vpop.permute.xlu0 %366
        %v373 = vunpack.c.l.b16 %v341
        %v374 = vunpack.c.l.b16 %v342
        %v375 = vunpack.c.l.b16 %v343
        %v376 = vunpack.c.l.b16 %v344
        %v377 = vpack.c.b16 %v374, %v373
        %v378 = vpack.c.b16 %v376, %v375
        %vm379 = vcmask 392192
        %v381 = vsel %vm379, %v377, 0
        %v384 = vsel %vm379, %v378, 0
        %386 = vmatprep.subr.bf16.mxu0 0
        %387 = vmatpush1.bf16.msra.mxu0 0
        %388 = vmatprep.subr.bf16.mxu0 0
        %389 = vmatpush1.bf16.msra.mxu0 0
        %390 = vmatprep.subr.bf16.mxu0 0
        %391 = vmatpush1.bf16.msra.mxu0 0
        %392 = vmatprep.subr.bf16.mxu0 0
        %393 = vmatpush1.bf16.msra.mxu0 0
        %394 = vmatprep.subr.bf16.mxu0 0
        %395 = vmatpush1.bf16.msra.mxu0 0
        %396 = vmatprep.subr.bf16.mxu0 %v338
        %397 = vmatpush1.bf16.msra.mxu0 %v337
        %398 = vmatprep.subr.bf16.mxu0 %v327
        %399 = vmatpush1.bf16.msra.mxu0 %v326
        %400 = vmatprep.subr.bf16.mxu0 %v311
        %401 = vmatpush1.bf16.msra.mxu0 %v310
        %402 = vmatprep.subr.bf16.mxu0 0
        %403 = vmatpush2.bf16.msra.mxu0 0
        %404 = vmatprep.subr.bf16.mxu0 0
        %405 = vmatpush2.bf16.msra.mxu0 0
        %406 = vmatprep.subr.bf16.mxu0 0
        %407 = vmatpush2.bf16.msra.mxu0 0
        %408 = vmatprep.subr.bf16.mxu0 0
        %409 = vmatpush2.bf16.msra.mxu0 0
        %410 = vmatprep.subr.bf16.mxu0 0
        %411 = vmatpush2.bf16.msra.mxu0 0
        %412 = vmatprep.subr.bf16.mxu0 0
        %413 = vmatpush2.bf16.msra.mxu0 0
        %414 = vmatprep.subr.bf16.mxu0 0
        %415 = vmatpush2.bf16.msra.mxu0 0
        %416 = vmatprep.subr.bf16.mxu0 0
        %417 = vmatpush2.bf16.msra.mxu0 0
        %418 = vmatprep.mubr.bf16.mxu0 0
        %419 = vmatmul.mubr.bf16.gmra.mxu0 %v381
        %v420 = vpop.f32.mrf.mxu0
        %v421 = vadd.f32 %v352, %v420
        %v422 = vpop.f32.mrf.mxu0
        %v423 = vadd.f32 %v352, %v422
        %v424 = vpop.f32.mrf.mxu0
        %v425 = vadd.f32 %v357, %v424
        %v426 = vpop.f32.mrf.mxu0
        %v427 = vadd.f32 %v357, %v426
        %428 = vmatprep.mubr.bf16.mxu0 0
        %429 = vmatmul.mubr.bf16.gmra.mxu0 %v384
        %v430 = vpop.f32.mrf.mxu0
        %v431 = vadd.f32 %v362, %v430
        %v432 = vpop.f32.mrf.mxu0
        %v433 = vadd.f32 %v362, %v432
        %v434 = vpop.f32.mrf.mxu0
        %v435 = vadd.f32 %v367, %v434
        %v436 = vpop.f32.mrf.mxu0
        %v437 = vadd.f32 %v367, %v436
        %438 = vdwg.mxu0
        %v439 = vmax.f32 %v421, 0.0
        %v440 = vmax.f32 %v423, 0.0
        %v441 = vmax.f32 %v425, 0.0
        %v442 = vmax.f32 %v427, 0.0
        %v443 = vmax.f32 %v431, 0.0
        %v444 = vmax.f32 %v433, 0.0
        %v445 = vmax.f32 %v435, 0.0
        %v446 = vmax.f32 %v437, 0.0
        %v447 = vld [vmem:[%s3] sm:$0xf]
        %v448 = vld [vmem:[%s3 + $0x4] sm:$0xf]
        %v449 = vld [vmem:[%s3 + $0x8] sm:$0xf]
        %v450 = vpack.c.bf16 %v441, %v439
        %v451 = vpack.c.bf16 %v442, %v440
        %v452 = vpack.c.bf16 %v445, %v443
        %v453 = vpack.c.bf16 %v446, %v444
        %v454 = vld [vmem:[%s4] sm:$0xff]
        %v455 = vld [vmem:[%s4 + $0x8] sm:$0xff]
        %v456 = vld [vmem:[%s4 + $0x10] sm:$0xff]
        %458 = vset.pattern.permute.xlu0 0
        %459 = vperm.xlu0 %458, %v454
        %v460 = vpop.permute.xlu0 %459
        %463 = vset.pattern.permute.xlu0 0
        %464 = vperm.xlu0 %463, %v455
        %v465 = vpop.permute.xlu0 %464
        %468 = vset.pattern.permute.xlu0 0
        %469 = vperm.xlu0 %468, %v456
        %v470 = vpop.permute.xlu0 %469
        %v475 = vunpack.c.l.b16 %v447
        %v476 = vunpack.c.l.b16 %v448
        %v477 = vunpack.c.l.b16 %v449
        %v478 = vpack.c.b16 %v476, %v475
        %v479 = vpack.c.b16 %v477, %v477
        %vm480 = vcmask 261120
        %v482 = vsel %vm480, %v478, 0
        %v485 = vsel %vm480, %v479, 0
        %487 = vmatprep.subr.bf16.mxu0 0
        %488 = vmatpush1.bf16.msra.mxu0 0
        %489 = vmatprep.subr.bf16.mxu0 0
        %490 = vmatpush1.bf16.msra.mxu0 0
        %491 = vmatprep.subr.bf16.mxu0 0
        %492 = vmatpush1.bf16.msra.mxu0 0
        %493 = vmatprep.subr.bf16.mxu0 0
        %494 = vmatpush1.bf16.msra.mxu0 0
        %495 = vmatprep.subr.bf16.mxu0 0
        %496 = vmatpush1.bf16.msra.mxu0 0
        %497 = vmatprep.subr.bf16.mxu0 0
        %498 = vmatpush1.bf16.msra.mxu0 0
        %499 = vmatprep.subr.bf16.mxu0 %v453
        %500 = vmatpush1.bf16.msra.mxu0 %v452
        %501 = vmatprep.subr.bf16.mxu0 %v451
        %502 = vmatpush1.bf16.msra.mxu0 %v450
        %503 = vmatprep.subr.bf16.mxu0 0
        %504 = vmatpush2.bf16.msra.mxu0 0
        %505 = vmatprep.subr.bf16.mxu0 0
        %506 = vmatpush2.bf16.msra.mxu0 0
        %507 = vmatprep.subr.bf16.mxu0 0
        %508 = vmatpush2.bf16.msra.mxu0 0
        %509 = vmatprep.subr.bf16.mxu0 0
        %510 = vmatpush2.bf16.msra.mxu0 0
        %511 = vmatprep.subr.bf16.mxu0 0
        %512 = vmatpush2.bf16.msra.mxu0 0
        %513 = vmatprep.subr.bf16.mxu0 0
        %514 = vmatpush2.bf16.msra.mxu0 0
        %515 = vmatprep.subr.bf16.mxu0 0
        %516 = vmatpush2.bf16.msra.mxu0 0
        %517 = vmatprep.subr.bf16.mxu0 0
        %518 = vmatpush2.bf16.msra.mxu0 0
        %519 = vmatprep.mubr.bf16.mxu0 0
        %520 = vmatmul.mubr.bf16.gmra.mxu0 %v482
        %v521 = vpop.f32.mrf.mxu0
        %v522 = vadd.f32 %v460, %v521
        %v523 = vpop.f32.mrf.mxu0
        %v524 = vadd.f32 %v460, %v523
        %v525 = vpop.f32.mrf.mxu0
        %v526 = vadd.f32 %v465, %v525
        %v527 = vpop.f32.mrf.mxu0
        %v528 = vadd.f32 %v465, %v527
        %529 = vmatprep.mubr.bf16.mxu0 0
        %530 = vmatmul.mubr.bf16.gmra.mxu0 %v485
        %v531 = vpop.f32.mrf.mxu0
        %v532 = vadd.f32 %v470, %v531
        %v533 = vpop.f32.mrf.mxu0
        %v534 = vadd.f32 %v470, %v533
        %v535 = vpop.f32.mrf.mxu0
        %v536 = vpop.f32.mrf.mxu0
        %537 = vdwg.mxu0
        %538 = vst [vmem:[%s279] sm:$0xff] %v522
        %539 = vst [vmem:[%s279 + $0x8] sm:$0xff] %v524
        %540 = vst [vmem:[%s286] sm:$0xff] %v526
        %541 = vst [vmem:[%s286 + $0x8] sm:$0xff] %v528
        %542 = vst [vmem:[%s286 + $0x10] sm:$0xff] %v532
        %543 = vst [vmem:[%s286 + $0x18] sm:$0xff] %v534
        %s544 = sand.u32 %s157, 1
        %s545 = scalar_lea.sflag [#allocation4], %s544
        %s546 = sand.u32 %s157, 1
        %s547 = smul.addr %s546, 16
        %s548 = scalar_lea.vmem [#allocation5], %s547
        %s549 = sand.u32 %s185, 1
        %s550 = scalar_lea.sflag [#allocation7], %s549
        %s551 = sand.u32 %s185, 1
        %s552 = smul.addr %s551, 32
        %s553 = scalar_lea.vmem [#allocation6], %s552
        // Predicated region
        $region45: #{tpu_custom_call.1} parent=39 // pred_check
          %p554 = pneg %p167
        $region46: #{tpu_custom_call.1} parent=39 // pred_check_branch
          %556 = sbr.rel (%p554) target = $region48
        $region47: #{tpu_custom_call.1} parent=39 // pred_region
          %s557 = smul.u32 2, %s30
          %s559 = ssub.s32 256, 256
          %560 = vsyncadd %s545, %s559
          %s561 = smul.addr %s29, 2
          %s562 = sadd.s32 %s557, %s561
          %s563 = smul.addr %s562, 128
          %s564 = scalar_lea.hbm %s5, %s563
          %s566 = sshll.u32 %s548, 4
          %s567 = int_to_ptr.vmem [resolvable:$true] %s566
          %569 = dma.vmem_to_hbm [thread:$0]  %s567, 256, %s564, %s545
        $region48: #{tpu_custom_call.1} parent=39 // pred_fallthru
          _
        // Predicated region
        $region49: #{tpu_custom_call.1} parent=39 // pred_check
          %p570 = pneg %p195
        $region50: #{tpu_custom_call.1} parent=39 // pred_check_branch
          %572 = sbr.rel (%p570) target = $region52
        $region51: #{tpu_custom_call.1} parent=39 // pred_region
          %s573 = smul.u32 2, %s30
          %s575 = ssub.s32 512, 512
          %576 = vsyncadd %s550, %s575
          %s577 = smul.addr %s29, 4
          %s578 = sadd.s32 %s573, %s577
          %s579 = smul.addr %s578, 128
          %s580 = scalar_lea.hbm %s6, %s579
          %s581 = sshll.u32 %s553, 4
          %s582 = int_to_ptr.vmem [resolvable:$true] %s581
          %587 = dma.vmem_to_hbm [thread:$0]  %s582, 512, %s580, %s550, 256, 256, 16
        $region52: #{tpu_custom_call.1} parent=39 // pred_fallthru
          _
      $region40: #{tpu_custom_call.1} parent=5 // pred_fallthru
        _
      %p588 = scmp.le.s32.totalorder 2, %s20
      // Predicated region
      $region53: #{tpu_custom_call.1} parent=5 // pred_check
        %p589 = pneg %p588
      $region54: #{tpu_custom_call.1} parent=5 // pred_check_branch
        %591 = sbr.rel (%p589) target = $region56
      $region55: #{tpu_custom_call.1} parent=5 // pred_region
        %s592 = ssub.s32 %s20, 2
        // Predicated region
        $region57: #{tpu_custom_call.1} parent=55 // pred_check
          %p593 = pneg %p173
        $region58: #{tpu_custom_call.1} parent=55 // pred_check_branch
          %595 = sbr.rel (%p593) target = $region60
        $region59: #{tpu_custom_call.1} parent=55 // pred_region
          %s596 = sand.u32 %s158, 1
          %s597 = scalar_lea.sflag [#allocation4], %s596
          %s598 = sand.u32 %s158, 1
          %s599 = smul.addr %s598, 16
          %s600 = scalar_lea.vmem [#allocation5], %s599
          %601 = dma.done %s597, 256
        $region60: #{tpu_custom_call.1} parent=55 // pred_fallthru
          _
        // Predicated region
        $region61: #{tpu_custom_call.1} parent=55 // pred_check
          %p602 = pneg %p201
        $region62: #{tpu_custom_call.1} parent=55 // pred_check_branch
          %604 = sbr.rel (%p602) target = $region64
        $region63: #{tpu_custom_call.1} parent=55 // pred_region
          %s605 = sand.u32 %s186, 1
          %s606 = scalar_lea.sflag [#allocation7], %s605
          %s607 = sand.u32 %s186, 1
          %s608 = smul.addr %s607, 32
          %s609 = scalar_lea.vmem [#allocation6], %s608
          %610 = dma.done %s606, 512
        $region64: #{tpu_custom_call.1} parent=55 // pred_fallthru
          _
      $region56: #{tpu_custom_call.1} parent=5 // pred_fallthru
        _
    $region6: #{tpu_custom_call.1} parent=1 // loop_footer
      %s24 = sadd.s32 1, %s20
    $region7: #{tpu_custom_call.1} parent=1 // loop_footer_branch
      %19 = sbr.rel target = $region3
    $region8: #{tpu_custom_call.1} parent=1 // loop_exit
      _
    %611 = vsyncpa [#allocation3], 1
    %s612 = scalar_lea.sflag [#allocation3], 1
    %613 = vsyncpa %s612, 1
    %614 = vsyncpa [#allocation4], 1
    %s615 = scalar_lea.sflag [#allocation4], 1
    %616 = vsyncpa %s615, 1
    %617 = vsyncpa [#allocation7], 1
    %s618 = scalar_lea.sflag [#allocation7], 1
    %619 = vsyncpa %s618, 1

</llo_original>
